<compile_context>
chip_gen: v6e
topology: v6e:2x2x1
jax: 0.10.0
libtpu: 0.0.40
codegen_flags: <defaults>
</compile_context>

<pallas_src>
import numpy as np
import jax
import jax.numpy as jnp
from jax.experimental import pallas as pl
from jax.experimental.pallas import tpu as pltpu

# ---- model hyper-params (consistent with the reference module) ----
C = 64              # channels_num (adjacency matrix is hard-coded 64x64 in the reference)
T = 16              # sample_len
B = 2               # batch
K = 1               # graph_convolution_kernel
N_LAYERS = 2        # graph_layer_num
HIDDEN = 100        # fc1 hidden size in the reference
HIDDEN_PAD = 128    # zero-padded for lane alignment
N_CLASSES = 2
BN_EPS = 1e-5

# eval-mode BatchNorm with default running stats -> pure scale (shift = 0)
BN_SCALE = float(1.0 / np.sqrt(1.0 + BN_EPS))


# ----------------------------- fused Pallas kernel -----------------------------

def gcn_fused_kernel(x_ref, avg_ref,
                     gkt_ref, w1_ref, b1_ref, w2_ref, b2_ref,
                     fc1w_ref, fc1b_ref, fc2w_ref, fc2b_ref,
                     o_ref):
    """Entire GCN forward: bn1 + N_LAYERS graph-conv layers + head, on a (B*T, C) slab."""
    # batch_norm1 (BatchNorm2d(1), eval) -> compile-time scalar scale
    x = x_ref[...] * BN_SCALE                               # (B*T, C)
    avg = avg_ref[...]                                      # (B, B*T) time-averaging matrix

    for l in range(N_LAYERS):                               # static unroll
        # --- MyChannelAttention: mean over time (as a matmul), fc1, tanh, fc2, mean over batch
        m = jnp.dot(avg, x, preferred_element_type=jnp.float32)            # (B, C)
        a1 = jnp.tanh(
            jnp.dot(m, w1_ref[l], preferred_element_type=jnp.float32) + b1_ref[l]
        )                                                                   # (B, 4)
        a2 = jnp.dot(a1, w2_ref[l], preferred_element_type=jnp.float32) + b2_ref[l]
        cha = jnp.mean(a2, axis=0, keepdims=True)                           # (1, C)

        # --- graph convolution: y = (cha * GK) @ x  (PyTorch (B,1,C,T) layout)
        #     in flat (B*T, C) layout: y = (x * cha) @ GK^T   (layer BN scale pre-folded into gkt)
        y = jnp.dot(x * cha, gkt_ref[l], preferred_element_type=jnp.float32)  # (B*T, C)
        x = jnp.maximum(y, 0.0)                                               # ReLU (+ folded BN)

    # --- head: adaptive_avg_pool over time + fc1/tanh + fc2 + softmax
    pooled = jnp.dot(avg, x, preferred_element_type=jnp.float32)            # (B, C)
    h = jnp.tanh(
        jnp.dot(pooled, fc1w_ref[...], preferred_element_type=jnp.float32) + fc1b_ref[...]
    )                                                                       # (B, 128) (cols >=100 are 0)
    logits = jnp.dot(h, fc2w_ref[...], preferred_element_type=jnp.float32) + fc2b_ref[...]
    z = logits - jnp.max(logits, axis=1, keepdims=True)
    e = jnp.exp(z)
    o_ref[...] = e * pl.reciprocal(jnp.sum(e, axis=1, keepdims=True), approx=True)


_VMEM = pl.BlockSpec(memory_space=pltpu.MemorySpace.VMEM)
_NUM_INPUTS = 11


def gcn_forward_fn(params, x_btc):
    """x_btc: (B, sample_len, channels_num) — same tensor the PyTorch module receives."""
    Bn, Tn, Cn = x_btc.shape
    x_flat = x_btc.astype(jnp.float32).reshape(Bn * Tn, Cn)   # contiguous flatten (wrapper-side)
    return pl.pallas_call(
        gcn_fused_kernel,
        out_shape=jax.ShapeDtypeStruct((Bn, N_CLASSES), jnp.float32),
        in_specs=[_VMEM] * _NUM_INPUTS,
        out_specs=_VMEM,
    )(x_flat, params["avg"],
      params["gk_t"], params["att_w1"], params["att_b1"],
      params["att_w2"], params["att_b2"],
      params["fc1_w"], params["fc1_b"], params["fc2_w"], params["fc2_b"])


gcn_forward = jax.jit(gcn_forward_fn)


# ----------------------------- parameter setup (glue) -----------------------------

def make_graph_eigvectors():
    # TODO(synk): the reference loads '/home/kul/models/edges.npy'; a deterministic
    # synthetic edge list (ring + skip connections) is used instead (no file IO).
    adjacency = np.zeros((64, 64), dtype=np.float64)
    edges = [(i, (i + 1) % 64) for i in range(64)] + [(i, (i + 5) % 64) for i in range(64)]
    for a, b in edges:
        adjacency[a][b] = 1.0
        adjacency[b][a] = 1.0
    adjacency = np.sign(adjacency + np.eye(C))
    laplacian = np.sum(adjacency, axis=0) * np.eye(64) - adjacency
    _, e_vectors = np.linalg.eig(laplacian)
    return np.real(e_vectors).astype(np.float32)               # (C, C)


def init_params(key):
    e_vec = jnp.asarray(make_graph_eigvectors())                # (C, C)
    keys = jax.random.split(key, 4 * N_LAYERS + 4)
    ki = iter(range(len(keys)))

    # constant time-averaging matrix: (B, B*T), avg[b, b*T + t] = 1/T
    avg = np.zeros((B, B * T), dtype=np.float32)
    for b in range(B):
        avg[b, b * T:(b + 1) * T] = 1.0 / T

    gk_t, w1, b1, w2, b2 = [], [], [], [], []
    for _ in range(N_LAYERS):
        # graph_kernel_param: randn(K=1, 1, C) -> diagonal values
        gk_param = jax.random.normal(keys[next(ki)], (K, 1, C), dtype=jnp.float32)
        diag_vals = gk_param[0, 0]                              # (C,)
        gk = e_vec @ jnp.diag(diag_vals) @ e_vec.T              # (C, C)  (parameter-only glue)
        # fold the layer's eval-mode BatchNorm scale into the (transposed) graph kernel
        gk_t.append(jnp.asarray(gk.T, dtype=jnp.float32) * BN_SCALE)
        w1.append(0.1 * jax.random.normal(keys[next(ki)], (C, 4), dtype=jnp.float32))
        b1.append(0.1 * jax.random.normal(keys[next(ki)], (1, 4), dtype=jnp.float32))
        w2.append(0.1 * jax.random.normal(keys[next(ki)], (4, C), dtype=jnp.float32))
        b2.append(jnp.zeros((1, C), dtype=jnp.float32))

    # head weights, fc1 hidden zero-padded 100 -> 128 (padded lanes contribute nothing:
    # tanh(0)=0 and the matching fc2 rows are zero)
    fc1_w = jnp.zeros((C * K, HIDDEN_PAD), dtype=jnp.float32)
    fc1_w = fc1_w.at[:, :HIDDEN].set(
        0.1 * jax.random.normal(keys[next(ki)], (C * K, HIDDEN), dtype=jnp.float32))
    fc1_b = jnp.zeros((1, HIDDEN_PAD), dtype=jnp.float32)
    fc1_b = fc1_b.at[:, :HIDDEN].set(
        0.1 * jax.random.normal(keys[next(ki)], (1, HIDDEN), dtype=jnp.float32))
    fc2_w = jnp.zeros((HIDDEN_PAD, N_CLASSES), dtype=jnp.float32)
    fc2_w = fc2_w.at[:HIDDEN, :].set(
        0.1 * jax.random.normal(keys[next(ki)], (HIDDEN, N_CLASSES), dtype=jnp.float32))
    fc2_b = jnp.zeros((1, N_CLASSES), dtype=jnp.float32)

    return dict(
        avg=jnp.asarray(avg),
        gk_t=jnp.stack(gk_t),        # (N_LAYERS, C, C)
        att_w1=jnp.stack(w1),        # (N_LAYERS, C, 4)
        att_b1=jnp.stack(b1),        # (N_LAYERS, 1, 4)
        att_w2=jnp.stack(w2),        # (N_LAYERS, 4, C)
        att_b2=jnp.stack(b2),        # (N_LAYERS, 1, C)
        fc1_w=fc1_w, fc1_b=fc1_b, fc2_w=fc2_w, fc2_b=fc2_b,
    )


if __name__ == "__main__":
    key = jax.random.PRNGKey(0)
    pkey, xkey = jax.random.split(key)
    params = init_params(pkey)
    x = jax.random.normal(xkey, (B, T, C), dtype=jnp.float32)   # (batch, sample_len, channels)
    out = gcn_forward(params, x)
    out = jax.block_until_ready(out)
    assert out.shape == (B, N_CLASSES)
    assert bool(jnp.all(jnp.isfinite(out)))
    # softmax rows should sum to ~1 (approx reciprocal -> slightly loose tolerance)
    assert bool(jnp.all(jnp.abs(jnp.sum(out, axis=1) - 1.0) < 2e-3))
    print("KERNEL_OK")
</pallas_src>

<mosaic_0001>
module attributes {stable_mosaic.version = 11 : i64} {
  func.func @gcn_fused_kernel(%arg0: memref<32x64xf32, #tpu.memory_space<vmem>>, %arg1: memref<2x32xf32, #tpu.memory_space<vmem>>, %arg2: memref<2x64x64xf32, #tpu.memory_space<vmem>>, %arg3: memref<2x64x4xf32, #tpu.memory_space<vmem>>, %arg4: memref<2x1x4xf32, #tpu.memory_space<vmem>>, %arg5: memref<2x4x64xf32, #tpu.memory_space<vmem>>, %arg6: memref<2x1x64xf32, #tpu.memory_space<vmem>>, %arg7: memref<64x128xf32, #tpu.memory_space<vmem>>, %arg8: memref<1x128xf32, #tpu.memory_space<vmem>>, %arg9: memref<128x2xf32, #tpu.memory_space<vmem>>, %arg10: memref<1x2xf32, #tpu.memory_space<vmem>>, %arg11: memref<2x2xf32, #tpu.memory_space<vmem>>) attributes {dimension_semantics = [], scalar_prefetch = 0 : i64, scratch_operands = 0 : i64, tpu.core_type = #tpu.core_type<tc>} {
    %c0 = arith.constant 0 : index
    %c0_0 = arith.constant 0 : index
    %0 = vector.load %arg0[%c0, %c0_0] : memref<32x64xf32, #tpu.memory_space<vmem>>, vector<32x64xf32>
    %cst = arith.constant 0.999994993 : f32
    %1 = vector.broadcast %cst : f32 to vector<32x64xf32>
    %2 = arith.mulf %0, %1 : vector<32x64xf32>
    %c0_1 = arith.constant 0 : index
    %c0_2 = arith.constant 0 : index
    %3 = vector.load %arg1[%c0_1, %c0_2] : memref<2x32xf32, #tpu.memory_space<vmem>>, vector<2x32xf32>
    %cst_3 = arith.constant dense<0.000000e+00> : vector<2x64xf32>
    %4 = tpu.matmul %3, %2, %cst_3 {dimension_numbers = #tpu.dot_dimension_numbers<[1], [0], [0], [1], [0, 0, 1, 1], [], []>} : vector<2x32xf32>, vector<32x64xf32>, vector<2x64xf32> -> vector<2x64xf32>
    %c0_4 = arith.constant 0 : index
    %c0_5 = arith.constant 0 : index
    %c0_6 = arith.constant 0 : index
    %5 = vector.load %arg3[%c0_4, %c0_5, %c0_6] : memref<2x64x4xf32, #tpu.memory_space<vmem>>, vector<1x64x4xf32>
    %6 = vector.shape_cast %5 : vector<1x64x4xf32> to vector<64x4xf32>
    %cst_7 = arith.constant dense<0.000000e+00> : vector<2x4xf32>
    %7 = tpu.matmul %4, %6, %cst_7 {dimension_numbers = #tpu.dot_dimension_numbers<[1], [0], [0], [1], [0, 0, 1, 1], [], []>} : vector<2x64xf32>, vector<64x4xf32>, vector<2x4xf32> -> vector<2x4xf32>
    %c0_8 = arith.constant 0 : index
    %c0_9 = arith.constant 0 : index
    %c0_10 = arith.constant 0 : index
    %8 = vector.load %arg4[%c0_8, %c0_9, %c0_10] : memref<2x1x4xf32, #tpu.memory_space<vmem>>, vector<1x1x4xf32>
    %9 = vector.shape_cast %8 : vector<1x1x4xf32> to vector<1x4xf32>
    %10 = vector.broadcast %9 : vector<1x4xf32> to vector<2x4xf32>
    %11 = arith.addf %7, %10 : vector<2x4xf32>
    %12 = math.tanh %11 : vector<2x4xf32>
    %c0_11 = arith.constant 0 : index
    %c0_12 = arith.constant 0 : index
    %c0_13 = arith.constant 0 : index
    %13 = vector.load %arg5[%c0_11, %c0_12, %c0_13] : memref<2x4x64xf32, #tpu.memory_space<vmem>>, vector<1x4x64xf32>
    %14 = vector.shape_cast %13 : vector<1x4x64xf32> to vector<4x64xf32>
    %cst_14 = arith.constant dense<0.000000e+00> : vector<2x64xf32>
    %15 = tpu.matmul %12, %14, %cst_14 {dimension_numbers = #tpu.dot_dimension_numbers<[1], [0], [0], [1], [0, 0, 1, 1], [], []>} : vector<2x4xf32>, vector<4x64xf32>, vector<2x64xf32> -> vector<2x64xf32>
    %c0_15 = arith.constant 0 : index
    %c0_16 = arith.constant 0 : index
    %c0_17 = arith.constant 0 : index
    %16 = vector.load %arg6[%c0_15, %c0_16, %c0_17] : memref<2x1x64xf32, #tpu.memory_space<vmem>>, vector<1x1x64xf32>
    %17 = vector.shape_cast %16 : vector<1x1x64xf32> to vector<1x64xf32>
    %18 = vector.broadcast %17 : vector<1x64xf32> to vector<2x64xf32>
    %19 = arith.addf %15, %18 : vector<2x64xf32>
    %cst_18 = arith.constant dense<0.000000e+00> : vector<64xf32>
    %20 = vector.multi_reduction <add>, %19, %cst_18 [0] : vector<2x64xf32> to vector<64xf32>
    %21 = vector.shape_cast %20 : vector<64xf32> to vector<1x64xf32>
    %cst_19 = arith.constant 2.000000e+00 : f32
    %22 = vector.broadcast %cst_19 : f32 to vector<1x64xf32>
    %23 = arith.divf %21, %22 : vector<1x64xf32>
    %24 = vector.broadcast %23 : vector<1x64xf32> to vector<32x64xf32>
    %25 = arith.mulf %2, %24 : vector<32x64xf32>
    %c0_20 = arith.constant 0 : index
    %c0_21 = arith.constant 0 : index
    %c0_22 = arith.constant 0 : index
    %26 = vector.load %arg2[%c0_20, %c0_21, %c0_22] : memref<2x64x64xf32, #tpu.memory_space<vmem>>, vector<1x64x64xf32>
    %27 = vector.shape_cast %26 : vector<1x64x64xf32> to vector<64x64xf32>
    %cst_23 = arith.constant dense<0.000000e+00> : vector<32x64xf32>
    %28 = tpu.matmul %25, %27, %cst_23 {dimension_numbers = #tpu.dot_dimension_numbers<[1], [0], [0], [1], [0, 0, 1, 1], [], []>} : vector<32x64xf32>, vector<64x64xf32>, vector<32x64xf32> -> vector<32x64xf32>
    %cst_24 = arith.constant 0.000000e+00 : f32
    %29 = vector.broadcast %cst_24 : f32 to vector<32x64xf32>
    %30 = arith.maximumf %28, %29 : vector<32x64xf32>
    %cst_25 = arith.constant dense<0.000000e+00> : vector<2x64xf32>
    %31 = tpu.matmul %3, %30, %cst_25 {dimension_numbers = #tpu.dot_dimension_numbers<[1], [0], [0], [1], [0, 0, 1, 1], [], []>} : vector<2x32xf32>, vector<32x64xf32>, vector<2x64xf32> -> vector<2x64xf32>
    %c1 = arith.constant 1 : index
    %c0_26 = arith.constant 0 : index
    %c0_27 = arith.constant 0 : index
    %32 = vector.load %arg3[%c1, %c0_26, %c0_27] : memref<2x64x4xf32, #tpu.memory_space<vmem>>, vector<1x64x4xf32>
    %33 = vector.shape_cast %32 : vector<1x64x4xf32> to vector<64x4xf32>
    %cst_28 = arith.constant dense<0.000000e+00> : vector<2x4xf32>
    %34 = tpu.matmul %31, %33, %cst_28 {dimension_numbers = #tpu.dot_dimension_numbers<[1], [0], [0], [1], [0, 0, 1, 1], [], []>} : vector<2x64xf32>, vector<64x4xf32>, vector<2x4xf32> -> vector<2x4xf32>
    %c1_29 = arith.constant 1 : index
    %c0_30 = arith.constant 0 : index
    %c0_31 = arith.constant 0 : index
    %35 = vector.load %arg4[%c1_29, %c0_30, %c0_31] : memref<2x1x4xf32, #tpu.memory_space<vmem>>, vector<1x1x4xf32>
    %36 = vector.shape_cast %35 : vector<1x1x4xf32> to vector<1x4xf32>
    %37 = vector.broadcast %36 : vector<1x4xf32> to vector<2x4xf32>
    %38 = arith.addf %34, %37 : vector<2x4xf32>
    %39 = math.tanh %38 : vector<2x4xf32>
    %c1_32 = arith.constant 1 : index
    %c0_33 = arith.constant 0 : index
    %c0_34 = arith.constant 0 : index
    %40 = vector.load %arg5[%c1_32, %c0_33, %c0_34] : memref<2x4x64xf32, #tpu.memory_space<vmem>>, vector<1x4x64xf32>
    %41 = vector.shape_cast %40 : vector<1x4x64xf32> to vector<4x64xf32>
    %cst_35 = arith.constant dense<0.000000e+00> : vector<2x64xf32>
    %42 = tpu.matmul %39, %41, %cst_35 {dimension_numbers = #tpu.dot_dimension_numbers<[1], [0], [0], [1], [0, 0, 1, 1], [], []>} : vector<2x4xf32>, vector<4x64xf32>, vector<2x64xf32> -> vector<2x64xf32>
    %c1_36 = arith.constant 1 : index
    %c0_37 = arith.constant 0 : index
    %c0_38 = arith.constant 0 : index
    %43 = vector.load %arg6[%c1_36, %c0_37, %c0_38] : memref<2x1x64xf32, #tpu.memory_space<vmem>>, vector<1x1x64xf32>
    %44 = vector.shape_cast %43 : vector<1x1x64xf32> to vector<1x64xf32>
    %45 = vector.broadcast %44 : vector<1x64xf32> to vector<2x64xf32>
    %46 = arith.addf %42, %45 : vector<2x64xf32>
    %cst_39 = arith.constant dense<0.000000e+00> : vector<64xf32>
    %47 = vector.multi_reduction <add>, %46, %cst_39 [0] : vector<2x64xf32> to vector<64xf32>
    %48 = vector.shape_cast %47 : vector<64xf32> to vector<1x64xf32>
    %cst_40 = arith.constant 2.000000e+00 : f32
    %49 = vector.broadcast %cst_40 : f32 to vector<1x64xf32>
    %50 = arith.divf %48, %49 : vector<1x64xf32>
    %51 = vector.broadcast %50 : vector<1x64xf32> to vector<32x64xf32>
    %52 = arith.mulf %30, %51 : vector<32x64xf32>
    %c1_41 = arith.constant 1 : index
    %c0_42 = arith.constant 0 : index
    %c0_43 = arith.constant 0 : index
    %53 = vector.load %arg2[%c1_41, %c0_42, %c0_43] : memref<2x64x64xf32, #tpu.memory_space<vmem>>, vector<1x64x64xf32>
    %54 = vector.shape_cast %53 : vector<1x64x64xf32> to vector<64x64xf32>
    %cst_44 = arith.constant dense<0.000000e+00> : vector<32x64xf32>
    %55 = tpu.matmul %52, %54, %cst_44 {dimension_numbers = #tpu.dot_dimension_numbers<[1], [0], [0], [1], [0, 0, 1, 1], [], []>} : vector<32x64xf32>, vector<64x64xf32>, vector<32x64xf32> -> vector<32x64xf32>
    %cst_45 = arith.constant 0.000000e+00 : f32
    %56 = vector.broadcast %cst_45 : f32 to vector<32x64xf32>
    %57 = arith.maximumf %55, %56 : vector<32x64xf32>
    %cst_46 = arith.constant dense<0.000000e+00> : vector<2x64xf32>
    %58 = tpu.matmul %3, %57, %cst_46 {dimension_numbers = #tpu.dot_dimension_numbers<[1], [0], [0], [1], [0, 0, 1, 1], [], []>} : vector<2x32xf32>, vector<32x64xf32>, vector<2x64xf32> -> vector<2x64xf32>
    %c0_47 = arith.constant 0 : index
    %c0_48 = arith.constant 0 : index
    %59 = vector.load %arg7[%c0_47, %c0_48] : memref<64x128xf32, #tpu.memory_space<vmem>>, vector<64x128xf32>
    %cst_49 = arith.constant dense<0.000000e+00> : vector<2x128xf32>
    %60 = tpu.matmul %58, %59, %cst_49 {dimension_numbers = #tpu.dot_dimension_numbers<[1], [0], [0], [1], [0, 0, 1, 1], [], []>} : vector<2x64xf32>, vector<64x128xf32>, vector<2x128xf32> -> vector<2x128xf32>
    %c0_50 = arith.constant 0 : index
    %c0_51 = arith.constant 0 : index
    %61 = vector.load %arg8[%c0_50, %c0_51] : memref<1x128xf32, #tpu.memory_space<vmem>>, vector<1x128xf32>
    %62 = vector.broadcast %61 : vector<1x128xf32> to vector<2x128xf32>
    %63 = arith.addf %60, %62 : vector<2x128xf32>
    %64 = math.tanh %63 : vector<2x128xf32>
    %c0_52 = arith.constant 0 : index
    %c0_53 = arith.constant 0 : index
    %65 = vector.load %arg9[%c0_52, %c0_53] : memref<128x2xf32, #tpu.memory_space<vmem>>, vector<128x2xf32>
    %cst_54 = arith.constant dense<0.000000e+00> : vector<2x2xf32>
    %66 = tpu.matmul %64, %65, %cst_54 {dimension_numbers = #tpu.dot_dimension_numbers<[1], [0], [0], [1], [0, 0, 1, 1], [], []>} : vector<2x128xf32>, vector<128x2xf32>, vector<2x2xf32> -> vector<2x2xf32>
    %c0_55 = arith.constant 0 : index
    %c0_56 = arith.constant 0 : index
    %67 = vector.load %arg10[%c0_55, %c0_56] : memref<1x2xf32, #tpu.memory_space<vmem>>, vector<1x2xf32>
    %68 = vector.broadcast %67 : vector<1x2xf32> to vector<2x2xf32>
    %69 = arith.addf %66, %68 : vector<2x2xf32>
    %cst_57 = arith.constant dense<0xFF800000> : vector<2xf32>
    %70 = vector.multi_reduction <maximumf>, %69, %cst_57 [1] : vector<2x2xf32> to vector<2xf32>
    %71 = vector.shape_cast %70 : vector<2xf32> to vector<2x1xf32>
    %72 = vector.broadcast %71 : vector<2x1xf32> to vector<2x2xf32>
    %73 = arith.subf %69, %72 : vector<2x2xf32>
    %74 = math.exp %73 : vector<2x2xf32>
    %cst_58 = arith.constant dense<0.000000e+00> : vector<2xf32>
    %75 = vector.multi_reduction <add>, %74, %cst_58 [1] : vector<2x2xf32> to vector<2xf32>
    %76 = vector.shape_cast %75 : vector<2xf32> to vector<2x1xf32>
    %77 = tpu.reciprocal %76 {approx = true} : vector<2x1xf32> -> vector<2x1xf32>
    %78 = vector.broadcast %77 : vector<2x1xf32> to vector<2x2xf32>
    %79 = arith.mulf %74, %78 : vector<2x2xf32>
    %c0_59 = arith.constant 0 : index
    %c0_60 = arith.constant 0 : index
    %80 = vector.load %arg11[%c0_59, %c0_60] : memref<2x2xf32, #tpu.memory_space<vmem>>, vector<2x2xf32>
    tpu.vector_store %arg11[%c0_59, %c0_60], %79 {strides = array<i32>} : memref<2x2xf32, #tpu.memory_space<vmem>>, vector<2x2xf32>,
    return
  }
}

</mosaic_0001>

<llo_original>
// kernel: gcn_forward_fn.1
$region0: #{gcn_forward_fn.1}
  #allocation0 [shape = 'u32[]', space=smem, size = 0x4, offset = 0x4, fixed_abs, tag = 'smem constant byte address 0x4 - core index']
  #allocation1 [shape = 'u32[144,128]{1,0:T(1,128)}', space=vmem, size = 0x12000, scoped, tag = 'internal scratch']
  %s0 = inlined_call_operand.vmem [shape: f32[32,64], index: 0, kind: input, shape index: {}]
  %s1 = inlined_call_operand.vmem [shape: f32[2,32], index: 1, kind: input, shape index: {}]
  %s2 = inlined_call_operand.vmem [shape: f32[2,64,64], index: 2, kind: input, shape index: {}]
  %s3 = inlined_call_operand.vmem [shape: f32[2,64,4], index: 3, kind: input, shape index: {}]
  %s4 = inlined_call_operand.vmem [shape: f32[2,1,4], index: 4, kind: input, shape index: {}]
  %s5 = inlined_call_operand.vmem [shape: f32[2,4,64], index: 5, kind: input, shape index: {}]
  %s6 = inlined_call_operand.vmem [shape: f32[2,1,64], index: 6, kind: input, shape index: {}]
  %s7 = inlined_call_operand.vmem [shape: f32[64,128], index: 7, kind: input, shape index: {}]
  %s8 = inlined_call_operand.vmem [shape: f32[1,128], index: 8, kind: input, shape index: {}]
  %s9 = inlined_call_operand.vmem [shape: f32[128,2], index: 9, kind: input, shape index: {}]
  %s10 = inlined_call_operand.vmem [shape: f32[1,2], index: 10, kind: input, shape index: {}]
  %s11 = inlined_call_operand.hbm [shape: f32[2,2], index: 11, kind: output, shape index: {}]
  %s12 = sld [smem:[#allocation0]]
  $region54: #{gcn_forward_fn.1} parent=0
    _
  %s14 = ssub.s32 1, %s12
  %s15 = scalar_select 0, %s14, %s12
  $region1: #{gcn_forward_fn.1} parent=0
    #allocation2 [shape = 'u8[1024]{0}', space=vmem, size = 0x400, scoped, tag = 'output window, operand 0, single buffered']
    #allocation3 [shape = 's32[1]{0}', space=sflag, size = 0x4, scoped, tag = 'scoped memory for gcn_forward_fn.1']
    %16 = vsyncpa [#allocation3], 0
    // Predicated region
    $region2: #{gcn_forward_fn.1} parent=1 // pred_check
      _
    $region3: #{gcn_forward_fn.1} parent=1 // pred_check_branch
      %18 = sbr.rel (0) target = $region5
    $region4: #{gcn_forward_fn.1} parent=1 // pred_region
      _
    $region5: #{gcn_forward_fn.1} parent=1 // pred_fallthru
      _
    // Predicated region
    $region6: #{gcn_forward_fn.1} parent=1 // pred_check
      _
    $region7: #{gcn_forward_fn.1} parent=1 // pred_check_branch
      %20 = sbr.rel (0) target = $region9
    $region8: #{gcn_forward_fn.1} parent=1 // pred_region
      _
    $region9: #{gcn_forward_fn.1} parent=1 // pred_fallthru
      _
    // Predicated region
    $region10: #{gcn_forward_fn.1} parent=1 // pred_check
      _
    $region11: #{gcn_forward_fn.1} parent=1 // pred_check_branch
      %22 = sbr.rel (0) target = $region13
    $region12: #{gcn_forward_fn.1} parent=1 // pred_region
      _
    $region13: #{gcn_forward_fn.1} parent=1 // pred_fallthru
      _
    // Predicated region
    $region14: #{gcn_forward_fn.1} parent=1 // pred_check
      _
    $region15: #{gcn_forward_fn.1} parent=1 // pred_check_branch
      %24 = sbr.rel (0) target = $region17
    $region16: #{gcn_forward_fn.1} parent=1 // pred_region
      _
    $region17: #{gcn_forward_fn.1} parent=1 // pred_fallthru
      _
    // Predicated region
    $region18: #{gcn_forward_fn.1} parent=1 // pred_check
      _
    $region19: #{gcn_forward_fn.1} parent=1 // pred_check_branch
      %26 = sbr.rel (0) target = $region21
    $region20: #{gcn_forward_fn.1} parent=1 // pred_region
      _
    $region21: #{gcn_forward_fn.1} parent=1 // pred_fallthru
      _
    // Predicated region
    $region22: #{gcn_forward_fn.1} parent=1 // pred_check
      _
    $region23: #{gcn_forward_fn.1} parent=1 // pred_check_branch
      %28 = sbr.rel (0) target = $region25
    $region24: #{gcn_forward_fn.1} parent=1 // pred_region
      _
    $region25: #{gcn_forward_fn.1} parent=1 // pred_fallthru
      _
    // Predicated region
    $region26: #{gcn_forward_fn.1} parent=1 // pred_check
      _
    $region27: #{gcn_forward_fn.1} parent=1 // pred_check_branch
      %30 = sbr.rel (0) target = $region29
    $region28: #{gcn_forward_fn.1} parent=1 // pred_region
      _
    $region29: #{gcn_forward_fn.1} parent=1 // pred_fallthru
      _
    // Predicated region
    $region30: #{gcn_forward_fn.1} parent=1 // pred_check
      _
    $region31: #{gcn_forward_fn.1} parent=1 // pred_check_branch
      %32 = sbr.rel (0) target = $region33
    $region32: #{gcn_forward_fn.1} parent=1 // pred_region
      _
    $region33: #{gcn_forward_fn.1} parent=1 // pred_fallthru
      _
    // Predicated region
    $region34: #{gcn_forward_fn.1} parent=1 // pred_check
      _
    $region35: #{gcn_forward_fn.1} parent=1 // pred_check_branch
      %34 = sbr.rel (0) target = $region37
    $region36: #{gcn_forward_fn.1} parent=1 // pred_region
      _
    $region37: #{gcn_forward_fn.1} parent=1 // pred_fallthru
      _
    // Predicated region
    $region38: #{gcn_forward_fn.1} parent=1 // pred_check
      _
    $region39: #{gcn_forward_fn.1} parent=1 // pred_check_branch
      %36 = sbr.rel (0) target = $region41
    $region40: #{gcn_forward_fn.1} parent=1 // pred_region
      _
    $region41: #{gcn_forward_fn.1} parent=1 // pred_fallthru
      _
    // Predicated region
    $region42: #{gcn_forward_fn.1} parent=1 // pred_check
      _
    $region43: #{gcn_forward_fn.1} parent=1 // pred_check_branch
      %38 = sbr.rel (0) target = $region45
    $region44: #{gcn_forward_fn.1} parent=1 // pred_region
      _
    $region45: #{gcn_forward_fn.1} parent=1 // pred_fallthru
      _
    %v39 = vld [vmem:[%s0] sm:$0xff]
    %v40 = vld [vmem:[%s0 + $0x8] sm:$0xff]
    %v41 = vld [vmem:[%s0 + $0x10] sm:$0xff]
    %v42 = vld [vmem:[%s0 + $0x18] sm:$0xff]
    %v43 = vmul.f32 %v39, 0.999995
    %v44 = vmul.f32 %v40, 0.999995
    %v45 = vmul.f32 %v41, 0.999995
    %v46 = vmul.f32 %v42, 0.999995
    %v47 = vld [vmem:[%s1] sm:$0x3]
    %vm48 = vcmask 261120
    %v50 = vsel %vm48, %v47, 0
    %52 = vmatprep.subr.mxu0 0.0
    %53 = vmatpush1.msra.mxu0 0.0
    %54 = vmatprep.subr.mxu0 0.0
    %55 = vmatpush1.msra.mxu0 0.0
    %56 = vmatprep.subr.mxu0 0.0
    %57 = vmatpush1.msra.mxu0 0.0
    %58 = vmatprep.subr.mxu0 0.0
    %59 = vmatpush1.msra.mxu0 0.0
    %60 = vmatprep.subr.mxu0 0.0
    %61 = vmatpush1.msra.mxu0 0.0
    %62 = vmatprep.subr.mxu0 0.0
    %63 = vmatpush1.msra.mxu0 0.0
    %64 = vmatprep.subr.mxu0 0.0
    %65 = vmatpush1.msra.mxu0 0.0
    %66 = vmatprep.subr.mxu0 0.0
    %67 = vmatpush1.msra.mxu0 0.0
    %68 = vmatprep.subr.mxu0 0.0
    %69 = vmatpush1.msra.mxu0 0.0
    %70 = vmatprep.subr.mxu0 0.0
    %71 = vmatpush1.msra.mxu0 0.0
    %72 = vmatprep.subr.mxu0 0.0
    %73 = vmatpush1.msra.mxu0 0.0
    %74 = vmatprep.subr.mxu0 0.0
    %75 = vmatpush1.msra.mxu0 0.0
    %76 = vmatprep.subr.mxu0 0.0
    %77 = vmatpush1.msra.mxu0 %v46
    %78 = vmatprep.subr.mxu0 0.0
    %79 = vmatpush1.msra.mxu0 %v45
    %80 = vmatprep.subr.mxu0 0.0
    %81 = vmatpush1.msra.mxu0 %v44
    %82 = vmatprep.subr.mxu0 0.0
    %83 = vmatpush1.msra.mxu0 %v43
    %84 = vmatprep.subr.mxu0 0.0
    %85 = vmatpush2.msra.mxu0 0.0
    %86 = vmatprep.subr.mxu0 0.0
    %87 = vmatpush2.msra.mxu0 0.0
    %88 = vmatprep.subr.mxu0 0.0
    %89 = vmatpush2.msra.mxu0 0.0
    %90 = vmatprep.subr.mxu0 0.0
    %91 = vmatpush2.msra.mxu0 0.0
    %92 = vmatprep.subr.mxu0 0.0
    %93 = vmatpush2.msra.mxu0 0.0
    %94 = vmatprep.subr.mxu0 0.0
    %95 = vmatpush2.msra.mxu0 0.0
    %96 = vmatprep.subr.mxu0 0.0
    %97 = vmatpush2.msra.mxu0 0.0
    %98 = vmatprep.subr.mxu0 0.0
    %99 = vmatpush2.msra.mxu0 0.0
    %100 = vmatprep.subr.mxu0 0.0
    %101 = vmatpush2.msra.mxu0 0.0
    %102 = vmatprep.subr.mxu0 0.0
    %103 = vmatpush2.msra.mxu0 0.0
    %104 = vmatprep.subr.mxu0 0.0
    %105 = vmatpush2.msra.mxu0 0.0
    %106 = vmatprep.subr.mxu0 0.0
    %107 = vmatpush2.msra.mxu0 0.0
    %108 = vmatprep.subr.mxu0 0.0
    %109 = vmatpush2.msra.mxu0 0.0
    %110 = vmatprep.subr.mxu0 0.0
    %111 = vmatpush2.msra.mxu0 0.0
    %112 = vmatprep.subr.mxu0 0.0
    %113 = vmatpush2.msra.mxu0 0.0
    %114 = vmatprep.subr.mxu0 0.0
    %115 = vmatpush2.msra.mxu0 0.0
    %116 = vmatprep.mubr.f32.mxu0 0.0
    %117 = vmatmul.mubr.f32.gmra.mxu0 %v50
    %v118 = vpop.f32.mrf.mxu0
    %v119 = vadd.f32 0.0, %v118
    %v120 = vpop.f32.mrf.mxu0
    %121 = vdwg.mxu0
    %v122 = vld [vmem:[%s3] sm:$0xff]
    %v123 = vld [vmem:[%s3 + $0x8] sm:$0xff]
    %v124 = vld [vmem:[%s3 + $0x10] sm:$0xff]
    %v125 = vld [vmem:[%s3 + $0x18] sm:$0xff]
    %v126 = vld [vmem:[%s3 + $0x20] sm:$0xff]
    %v127 = vld [vmem:[%s3 + $0x28] sm:$0xff]
    %v128 = vld [vmem:[%s3 + $0x30] sm:$0xff]
    %v129 = vld [vmem:[%s3 + $0x38] sm:$0xff]
    %v130 = vld [vmem:[%s4] sm:$0x1]
    %v132 = vlaneseq
    %v133 = vshrl.u32 %v132, 7
    %v134 = vsub.s32 0, %v133
    %v135 = vrot.slane %v130, %v134
    %vm137 = vcmask 523264
    %v139 = vsel %vm137, %v119, 0
    %141 = vmatprep.subr.mxu0 0.0
    %142 = vmatpush1.msra.mxu0 0.0
    %143 = vmatprep.subr.mxu0 0.0
    %144 = vmatpush1.msra.mxu0 0.0
    %145 = vmatprep.subr.mxu0 0.0
    %146 = vmatpush1.msra.mxu0 0.0
    %147 = vmatprep.subr.mxu0 0.0
    %148 = vmatpush1.msra.mxu0 0.0
    %149 = vmatprep.subr.mxu0 0.0
    %150 = vmatpush1.msra.mxu0 0.0
    %151 = vmatprep.subr.mxu0 0.0
    %152 = vmatpush1.msra.mxu0 0.0
    %153 = vmatprep.subr.mxu0 0.0
    %154 = vmatpush1.msra.mxu0 0.0
    %155 = vmatprep.subr.mxu0 0.0
    %156 = vmatpush1.msra.mxu0 0.0
    %157 = vmatprep.subr.mxu0 0.0
    %158 = vmatpush1.msra.mxu0 %v129
    %159 = vmatprep.subr.mxu0 0.0
    %160 = vmatpush1.msra.mxu0 %v128
    %161 = vmatprep.subr.mxu0 0.0
    %162 = vmatpush1.msra.mxu0 %v127
    %163 = vmatprep.subr.mxu0 0.0
    %164 = vmatpush1.msra.mxu0 %v126
    %165 = vmatprep.subr.mxu0 0.0
    %166 = vmatpush1.msra.mxu0 %v125
    %167 = vmatprep.subr.mxu0 0.0
    %168 = vmatpush1.msra.mxu0 %v124
    %169 = vmatprep.subr.mxu0 0.0
    %170 = vmatpush1.msra.mxu0 %v123
    %171 = vmatprep.subr.mxu0 0.0
    %172 = vmatpush1.msra.mxu0 %v122
    %173 = vmatprep.subr.mxu0 0.0
    %174 = vmatpush2.msra.mxu0 0.0
    %175 = vmatprep.subr.mxu0 0.0
    %176 = vmatpush2.msra.mxu0 0.0
    %177 = vmatprep.subr.mxu0 0.0
    %178 = vmatpush2.msra.mxu0 0.0
    %179 = vmatprep.subr.mxu0 0.0
    %180 = vmatpush2.msra.mxu0 0.0
    %181 = vmatprep.subr.mxu0 0.0
    %182 = vmatpush2.msra.mxu0 0.0
    %183 = vmatprep.subr.mxu0 0.0
    %184 = vmatpush2.msra.mxu0 0.0
    %185 = vmatprep.subr.mxu0 0.0
    %186 = vmatpush2.msra.mxu0 0.0
    %187 = vmatprep.subr.mxu0 0.0
    %188 = vmatpush2.msra.mxu0 0.0
    %189 = vmatprep.subr.mxu0 0.0
    %190 = vmatpush2.msra.mxu0 0.0
    %191 = vmatprep.subr.mxu0 0.0
    %192 = vmatpush2.msra.mxu0 0.0
    %193 = vmatprep.subr.mxu0 0.0
    %194 = vmatpush2.msra.mxu0 0.0
    %195 = vmatprep.subr.mxu0 0.0
    %196 = vmatpush2.msra.mxu0 0.0
    %197 = vmatprep.subr.mxu0 0.0
    %198 = vmatpush2.msra.mxu0 0.0
    %199 = vmatprep.subr.mxu0 0.0
    %200 = vmatpush2.msra.mxu0 0.0
    %201 = vmatprep.subr.mxu0 0.0
    %202 = vmatpush2.msra.mxu0 0.0
    %203 = vmatprep.subr.mxu0 0.0
    %204 = vmatpush2.msra.mxu0 0.0
    %205 = vmatprep.mubr.f32.mxu0 0.0
    %206 = vmatmul.mubr.f32.gmra.mxu0 %v139
    %v207 = vpop.f32.mrf.mxu0
    %v208 = vadd.f32 %v135, %v207
    %v209 = vpop.f32.mrf.mxu0
    %210 = vdwg.mxu0
    %v211 = vtanh.pop %v208
    %v212 = vld [vmem:[%s5] sm:$0xf]
    %v213 = vld [vmem:[%s6] sm:$0x1]
    %v215 = vlaneseq
    %v216 = vshrl.u32 %v215, 7
    %v217 = vsub.s32 0, %v216
    %v218 = vrot.slane %v213, %v217
    %vm220 = vcmask 31744
    %v222 = vsel %vm220, %v211, 0
    %vm224 = vcmask 1043456
    %v226 = vsel %vm224, %v212, 0
    %228 = vmatprep.subr.mxu0 0.0
    %229 = vmatpush1.msra.mxu0 0.0
    %230 = vmatprep.subr.mxu0 0.0
    %231 = vmatpush1.msra.mxu0 0.0
    %232 = vmatprep.subr.mxu0 0.0
    %233 = vmatpush1.msra.mxu0 0.0
    %234 = vmatprep.subr.mxu0 0.0
    %235 = vmatpush1.msra.mxu0 0.0
    %236 = vmatprep.subr.mxu0 0.0
    %237 = vmatpush1.msra.mxu0 0.0
    %238 = vmatprep.subr.mxu0 0.0
    %239 = vmatpush1.msra.mxu0 0.0
    %240 = vmatprep.subr.mxu0 0.0
    %241 = vmatpush1.msra.mxu0 0.0
    %242 = vmatprep.subr.mxu0 0.0
    %243 = vmatpush1.msra.mxu0 0.0
    %244 = vmatprep.subr.mxu0 0.0
    %245 = vmatpush1.msra.mxu0 0.0
    %246 = vmatprep.subr.mxu0 0.0
    %247 = vmatpush1.msra.mxu0 0.0
    %248 = vmatprep.subr.mxu0 0.0
    %249 = vmatpush1.msra.mxu0 0.0
    %250 = vmatprep.subr.mxu0 0.0
    %251 = vmatpush1.msra.mxu0 0.0
    %252 = vmatprep.subr.mxu0 0.0
    %253 = vmatpush1.msra.mxu0 0.0
    %254 = vmatprep.subr.mxu0 0.0
    %255 = vmatpush1.msra.mxu0 0.0
    %256 = vmatprep.subr.mxu0 0.0
    %257 = vmatpush1.msra.mxu0 0.0
    %258 = vmatprep.subr.mxu0 0.0
    %259 = vmatpush1.msra.mxu0 %v226
    %260 = vmatprep.subr.mxu0 0.0
    %261 = vmatpush2.msra.mxu0 0.0
    %262 = vmatprep.subr.mxu0 0.0
    %263 = vmatpush2.msra.mxu0 0.0
    %264 = vmatprep.subr.mxu0 0.0
    %265 = vmatpush2.msra.mxu0 0.0
    %266 = vmatprep.subr.mxu0 0.0
    %267 = vmatpush2.msra.mxu0 0.0
    %268 = vmatprep.subr.mxu0 0.0
    %269 = vmatpush2.msra.mxu0 0.0
    %270 = vmatprep.subr.mxu0 0.0
    %271 = vmatpush2.msra.mxu0 0.0
    %272 = vmatprep.subr.mxu0 0.0
    %273 = vmatpush2.msra.mxu0 0.0
    %274 = vmatprep.subr.mxu0 0.0
    %275 = vmatpush2.msra.mxu0 0.0
    %276 = vmatprep.subr.mxu0 0.0
    %277 = vmatpush2.msra.mxu0 0.0
    %278 = vmatprep.subr.mxu0 0.0
    %279 = vmatpush2.msra.mxu0 0.0
    %280 = vmatprep.subr.mxu0 0.0
    %281 = vmatpush2.msra.mxu0 0.0
    %282 = vmatprep.subr.mxu0 0.0
    %283 = vmatpush2.msra.mxu0 0.0
    %284 = vmatprep.subr.mxu0 0.0
    %285 = vmatpush2.msra.mxu0 0.0
    %286 = vmatprep.subr.mxu0 0.0
    %287 = vmatpush2.msra.mxu0 0.0
    %288 = vmatprep.subr.mxu0 0.0
    %289 = vmatpush2.msra.mxu0 0.0
    %290 = vmatprep.subr.mxu0 0.0
    %291 = vmatpush2.msra.mxu0 0.0
    %292 = vmatprep.mubr.f32.mxu0 0.0
    %293 = vmatmul.mubr.f32.gmra.mxu0 %v222
    %v294 = vpop.f32.mrf.mxu0
    %v295 = vadd.f32 %v218, %v294
    %v296 = vpop.f32.mrf.mxu0
    %297 = vdwg.mxu0
    %vm298 = vcmask 517120
    %v299 = vsel %vm298, %v295, 0.0
    %v300 = vrot.slane %v299, 4
    %v301 = vadd.f32 %v299, %v300
    %v302 = vrot.slane %v301, 2
    %v303 = vadd.f32 %v301, %v302
    %v304 = vrot.slane %v303, 1
    %v305 = vadd.f32 %v303, %v304
    %v306 = vrcp.pop 2.0
    %v307 = vmul.f32 %v305, %v306
    %v308 = vmul.f32 %v43, %v307
    %v309 = vmul.f32 %v44, %v307
    %v310 = vmul.f32 %v45, %v307
    %v311 = vmul.f32 %v46, %v307
    %v312 = vld [vmem:[%s2] sm:$0xff]
    %v313 = vld [vmem:[%s2 + $0x8] sm:$0xff]
    %v314 = vld [vmem:[%s2 + $0x10] sm:$0xff]
    %v315 = vld [vmem:[%s2 + $0x18] sm:$0xff]
    %v316 = vld [vmem:[%s2 + $0x20] sm:$0xff]
    %v317 = vld [vmem:[%s2 + $0x28] sm:$0xff]
    %v318 = vld [vmem:[%s2 + $0x30] sm:$0xff]
    %v319 = vld [vmem:[%s2 + $0x38] sm:$0xff]
    %v321 = vsel %vm137, %v308, 0
    %v324 = vsel %vm137, %v309, 0
    %v327 = vsel %vm137, %v310, 0
    %v330 = vsel %vm137, %v311, 0
    %332 = vmatprep.subr.mxu0 0.0
    %333 = vmatpush1.msra.mxu0 0.0
    %334 = vmatprep.subr.mxu0 0.0
    %335 = vmatpush1.msra.mxu0 0.0
    %336 = vmatprep.subr.mxu0 0.0
    %337 = vmatpush1.msra.mxu0 0.0
    %338 = vmatprep.subr.mxu0 0.0
    %339 = vmatpush1.msra.mxu0 0.0
    %340 = vmatprep.subr.mxu0 0.0
    %341 = vmatpush1.msra.mxu0 0.0
    %342 = vmatprep.subr.mxu0 0.0
    %343 = vmatpush1.msra.mxu0 0.0
    %344 = vmatprep.subr.mxu0 0.0
    %345 = vmatpush1.msra.mxu0 0.0
    %346 = vmatprep.subr.mxu0 0.0
    %347 = vmatpush1.msra.mxu0 0.0
    %348 = vmatprep.subr.mxu0 0.0
    %349 = vmatpush1.msra.mxu0 %v319
    %350 = vmatprep.subr.mxu0 0.0
    %351 = vmatpush1.msra.mxu0 %v318
    %352 = vmatprep.subr.mxu0 0.0
    %353 = vmatpush1.msra.mxu0 %v317
    %354 = vmatprep.subr.mxu0 0.0
    %355 = vmatpush1.msra.mxu0 %v316
    %356 = vmatprep.subr.mxu0 0.0
    %357 = vmatpush1.msra.mxu0 %v315
    %358 = vmatprep.subr.mxu0 0.0
    %359 = vmatpush1.msra.mxu0 %v314
    %360 = vmatprep.subr.mxu0 0.0
    %361 = vmatpush1.msra.mxu0 %v313
    %362 = vmatprep.subr.mxu0 0.0
    %363 = vmatpush1.msra.mxu0 %v312
    %364 = vmatprep.subr.mxu0 0.0
    %365 = vmatpush2.msra.mxu0 0.0
    %366 = vmatprep.subr.mxu0 0.0
    %367 = vmatpush2.msra.mxu0 0.0
    %368 = vmatprep.subr.mxu0 0.0
    %369 = vmatpush2.msra.mxu0 0.0
    %370 = vmatprep.subr.mxu0 0.0
    %371 = vmatpush2.msra.mxu0 0.0
    %372 = vmatprep.subr.mxu0 0.0
    %373 = vmatpush2.msra.mxu0 0.0
    %374 = vmatprep.subr.mxu0 0.0
    %375 = vmatpush2.msra.mxu0 0.0
    %376 = vmatprep.subr.mxu0 0.0
    %377 = vmatpush2.msra.mxu0 0.0
    %378 = vmatprep.subr.mxu0 0.0
    %379 = vmatpush2.msra.mxu0 0.0
    %380 = vmatprep.subr.mxu0 0.0
    %381 = vmatpush2.msra.mxu0 0.0
    %382 = vmatprep.subr.mxu0 0.0
    %383 = vmatpush2.msra.mxu0 0.0
    %384 = vmatprep.subr.mxu0 0.0
    %385 = vmatpush2.msra.mxu0 0.0
    %386 = vmatprep.subr.mxu0 0.0
    %387 = vmatpush2.msra.mxu0 0.0
    %388 = vmatprep.subr.mxu0 0.0
    %389 = vmatpush2.msra.mxu0 0.0
    %390 = vmatprep.subr.mxu0 0.0
    %391 = vmatpush2.msra.mxu0 0.0
    %392 = vmatprep.subr.mxu0 0.0
    %393 = vmatpush2.msra.mxu0 0.0
    %394 = vmatprep.subr.mxu0 0.0
    %395 = vmatpush2.msra.mxu0 0.0
    %396 = vmatprep.mubr.f32.mxu0 0.0
    %397 = vmatmul.mubr.f32.gmra.mxu0 %v321
    %v398 = vpop.f32.mrf.mxu0
    %v399 = vadd.f32 0.0, %v398
    %v400 = vpop.f32.mrf.mxu0
    %401 = vmatprep.mubr.f32.mxu0 0.0
    %402 = vmatmul.mubr.f32.gmra.mxu0 %v324
    %v403 = vpop.f32.mrf.mxu0
    %v404 = vadd.f32 0.0, %v403
    %v405 = vpop.f32.mrf.mxu0
    %406 = vmatprep.mubr.f32.mxu0 0.0
    %407 = vmatmul.mubr.f32.gmra.mxu0 %v327
    %v408 = vpop.f32.mrf.mxu0
    %v409 = vadd.f32 0.0, %v408
    %v410 = vpop.f32.mrf.mxu0
    %411 = vmatprep.mubr.f32.mxu0 0.0
    %412 = vmatmul.mubr.f32.gmra.mxu0 %v330
    %v413 = vpop.f32.mrf.mxu0
    %v414 = vadd.f32 0.0, %v413
    %v415 = vpop.f32.mrf.mxu0
    %416 = vdwg.mxu0
    %v417 = vmax.f32 %v399, 0.0
    %v418 = vmax.f32 %v404, 0.0
    %v419 = vmax.f32 %v409, 0.0
    %v420 = vmax.f32 %v414, 0.0
    %421 = vmatprep.subr.mxu0 0.0
    %422 = vmatpush1.msra.mxu0 0.0
    %423 = vmatprep.subr.mxu0 0.0
    %424 = vmatpush1.msra.mxu0 0.0
    %425 = vmatprep.subr.mxu0 0.0
    %426 = vmatpush1.msra.mxu0 0.0
    %427 = vmatprep.subr.mxu0 0.0
    %428 = vmatpush1.msra.mxu0 0.0
    %429 = vmatprep.subr.mxu0 0.0
    %430 = vmatpush1.msra.mxu0 0.0
    %431 = vmatprep.subr.mxu0 0.0
    %432 = vmatpush1.msra.mxu0 0.0
    %433 = vmatprep.subr.mxu0 0.0
    %434 = vmatpush1.msra.mxu0 0.0
    %435 = vmatprep.subr.mxu0 0.0
    %436 = vmatpush1.msra.mxu0 0.0
    %437 = vmatprep.subr.mxu0 0.0
    %438 = vmatpush1.msra.mxu0 0.0
    %439 = vmatprep.subr.mxu0 0.0
    %440 = vmatpush1.msra.mxu0 0.0
    %441 = vmatprep.subr.mxu0 0.0
    %442 = vmatpush1.msra.mxu0 0.0
    %443 = vmatprep.subr.mxu0 0.0
    %444 = vmatpush1.msra.mxu0 0.0
    %445 = vmatprep.subr.mxu0 0.0
    %446 = vmatpush1.msra.mxu0 %v420
    %447 = vmatprep.subr.mxu0 0.0
    %448 = vmatpush1.msra.mxu0 %v419
    %449 = vmatprep.subr.mxu0 0.0
    %450 = vmatpush1.msra.mxu0 %v418
    %451 = vmatprep.subr.mxu0 0.0
    %452 = vmatpush1.msra.mxu0 %v417
    %453 = vmatprep.subr.mxu0 0.0
    %454 = vmatpush2.msra.mxu0 0.0
    %455 = vmatprep.subr.mxu0 0.0
    %456 = vmatpush2.msra.mxu0 0.0
    %457 = vmatprep.subr.mxu0 0.0
    %458 = vmatpush2.msra.mxu0 0.0
    %459 = vmatprep.subr.mxu0 0.0
    %460 = vmatpush2.msra.mxu0 0.0
    %461 = vmatprep.subr.mxu0 0.0
    %462 = vmatpush2.msra.mxu0 0.0
    %463 = vmatprep.subr.mxu0 0.0
    %464 = vmatpush2.msra.mxu0 0.0
    %465 = vmatprep.subr.mxu0 0.0
    %466 = vmatpush2.msra.mxu0 0.0
    %467 = vmatprep.subr.mxu0 0.0
    %468 = vmatpush2.msra.mxu0 0.0
    %469 = vmatprep.subr.mxu0 0.0
    %470 = vmatpush2.msra.mxu0 0.0
    %471 = vmatprep.subr.mxu0 0.0
    %472 = vmatpush2.msra.mxu0 0.0
    %473 = vmatprep.subr.mxu0 0.0
    %474 = vmatpush2.msra.mxu0 0.0
    %475 = vmatprep.subr.mxu0 0.0
    %476 = vmatpush2.msra.mxu0 0.0
    %477 = vmatprep.subr.mxu0 0.0
    %478 = vmatpush2.msra.mxu0 0.0
    %479 = vmatprep.subr.mxu0 0.0
    %480 = vmatpush2.msra.mxu0 0.0
    %481 = vmatprep.subr.mxu0 0.0
    %482 = vmatpush2.msra.mxu0 0.0
    %483 = vmatprep.subr.mxu0 0.0
    %484 = vmatpush2.msra.mxu0 0.0
    %485 = vmatprep.mubr.f32.mxu0 0.0
    %486 = vmatmul.mubr.f32.gmra.mxu0 %v50
    %v487 = vpop.f32.mrf.mxu0
    %v488 = vadd.f32 0.0, %v487
    %v489 = vpop.f32.mrf.mxu0
    %490 = vdwg.mxu0
    %s491 = scalar_lea.vmem %s3, 64
    %v492 = vld [vmem:[%s491] sm:$0xff]
    %v493 = vld [vmem:[%s491 + $0x8] sm:$0xff]
    %v494 = vld [vmem:[%s491 + $0x10] sm:$0xff]
    %v495 = vld [vmem:[%s491 + $0x18] sm:$0xff]
    %v496 = vld [vmem:[%s491 + $0x20] sm:$0xff]
    %v497 = vld [vmem:[%s491 + $0x28] sm:$0xff]
    %v498 = vld [vmem:[%s491 + $0x30] sm:$0xff]
    %v499 = vld [vmem:[%s491 + $0x38] sm:$0xff]
    %s500 = scalar_lea.vmem %s4, 1
    %v501 = vld [vmem:[%s500] sm:$0x1]
    %v503 = vlaneseq
    %v504 = vshrl.u32 %v503, 7
    %v505 = vsub.s32 0, %v504
    %v506 = vrot.slane %v501, %v505
    %v509 = vsel %vm137, %v488, 0
    %511 = vmatprep.subr.mxu0 0.0
    %512 = vmatpush1.msra.mxu0 0.0
    %513 = vmatprep.subr.mxu0 0.0
    %514 = vmatpush1.msra.mxu0 0.0
    %515 = vmatprep.subr.mxu0 0.0
    %516 = vmatpush1.msra.mxu0 0.0
    %517 = vmatprep.subr.mxu0 0.0
    %518 = vmatpush1.msra.mxu0 0.0
    %519 = vmatprep.subr.mxu0 0.0
    %520 = vmatpush1.msra.mxu0 0.0
    %521 = vmatprep.subr.mxu0 0.0
    %522 = vmatpush1.msra.mxu0 0.0
    %523 = vmatprep.subr.mxu0 0.0
    %524 = vmatpush1.msra.mxu0 0.0
    %525 = vmatprep.subr.mxu0 0.0
    %526 = vmatpush1.msra.mxu0 0.0
    %527 = vmatprep.subr.mxu0 0.0
    %528 = vmatpush1.msra.mxu0 %v499
    %529 = vmatprep.subr.mxu0 0.0
    %530 = vmatpush1.msra.mxu0 %v498
    %531 = vmatprep.subr.mxu0 0.0
    %532 = vmatpush1.msra.mxu0 %v497
    %533 = vmatprep.subr.mxu0 0.0
    %534 = vmatpush1.msra.mxu0 %v496
    %535 = vmatprep.subr.mxu0 0.0
    %536 = vmatpush1.msra.mxu0 %v495
    %537 = vmatprep.subr.mxu0 0.0
    %538 = vmatpush1.msra.mxu0 %v494
    %539 = vmatprep.subr.mxu0 0.0
    %540 = vmatpush1.msra.mxu0 %v493
    %541 = vmatprep.subr.mxu0 0.0
    %542 = vmatpush1.msra.mxu0 %v492
    %543 = vmatprep.subr.mxu0 0.0
    %544 = vmatpush2.msra.mxu0 0.0
    %545 = vmatprep.subr.mxu0 0.0
    %546 = vmatpush2.msra.mxu0 0.0
    %547 = vmatprep.subr.mxu0 0.0
    %548 = vmatpush2.msra.mxu0 0.0
    %549 = vmatprep.subr.mxu0 0.0
    %550 = vmatpush2.msra.mxu0 0.0
    %551 = vmatprep.subr.mxu0 0.0
    %552 = vmatpush2.msra.mxu0 0.0
    %553 = vmatprep.subr.mxu0 0.0
    %554 = vmatpush2.msra.mxu0 0.0
    %555 = vmatprep.subr.mxu0 0.0
    %556 = vmatpush2.msra.mxu0 0.0
    %557 = vmatprep.subr.mxu0 0.0
    %558 = vmatpush2.msra.mxu0 0.0
    %559 = vmatprep.subr.mxu0 0.0
    %560 = vmatpush2.msra.mxu0 0.0
    %561 = vmatprep.subr.mxu0 0.0
    %562 = vmatpush2.msra.mxu0 0.0
    %563 = vmatprep.subr.mxu0 0.0
    %564 = vmatpush2.msra.mxu0 0.0
    %565 = vmatprep.subr.mxu0 0.0
    %566 = vmatpush2.msra.mxu0 0.0
    %567 = vmatprep.subr.mxu0 0.0
    %568 = vmatpush2.msra.mxu0 0.0
    %569 = vmatprep.subr.mxu0 0.0
    %570 = vmatpush2.msra.mxu0 0.0
    %571 = vmatprep.subr.mxu0 0.0
    %572 = vmatpush2.msra.mxu0 0.0
    %573 = vmatprep.subr.mxu0 0.0
    %574 = vmatpush2.msra.mxu0 0.0
    %575 = vmatprep.mubr.f32.mxu0 0.0
    %576 = vmatmul.mubr.f32.gmra.mxu0 %v509
    %v577 = vpop.f32.mrf.mxu0
    %v578 = vadd.f32 %v506, %v577
    %v579 = vpop.f32.mrf.mxu0
    %580 = vdwg.mxu0
    %v581 = vtanh.pop %v578
    %s582 = scalar_lea.vmem %s5, 4
    %v583 = vld [vmem:[%s582] sm:$0xf]
    %s584 = scalar_lea.vmem %s6, 1
    %v585 = vld [vmem:[%s584] sm:$0x1]
    %v587 = vlaneseq
    %v588 = vshrl.u32 %v587, 7
    %v589 = vsub.s32 0, %v588
    %v590 = vrot.slane %v585, %v589
    %v593 = vsel %vm220, %v581, 0
    %v596 = vsel %vm224, %v583, 0
    %598 = vmatprep.subr.mxu0 0.0
    %599 = vmatpush1.msra.mxu0 0.0
    %600 = vmatprep.subr.mxu0 0.0
    %601 = vmatpush1.msra.mxu0 0.0
    %602 = vmatprep.subr.mxu0 0.0
    %603 = vmatpush1.msra.mxu0 0.0
    %604 = vmatprep.subr.mxu0 0.0
    %605 = vmatpush1.msra.mxu0 0.0
    %606 = vmatprep.subr.mxu0 0.0
    %607 = vmatpush1.msra.mxu0 0.0
    %608 = vmatprep.subr.mxu0 0.0
    %609 = vmatpush1.msra.mxu0 0.0
    %610 = vmatprep.subr.mxu0 0.0
    %611 = vmatpush1.msra.mxu0 0.0
    %612 = vmatprep.subr.mxu0 0.0
    %613 = vmatpush1.msra.mxu0 0.0
    %614 = vmatprep.subr.mxu0 0.0
    %615 = vmatpush1.msra.mxu0 0.0
    %616 = vmatprep.subr.mxu0 0.0
    %617 = vmatpush1.msra.mxu0 0.0
    %618 = vmatprep.subr.mxu0 0.0
    %619 = vmatpush1.msra.mxu0 0.0
    %620 = vmatprep.subr.mxu0 0.0
    %621 = vmatpush1.msra.mxu0 0.0
    %622 = vmatprep.subr.mxu0 0.0
    %623 = vmatpush1.msra.mxu0 0.0
    %624 = vmatprep.subr.mxu0 0.0
    %625 = vmatpush1.msra.mxu0 0.0
    %626 = vmatprep.subr.mxu0 0.0
    %627 = vmatpush1.msra.mxu0 0.0
    %628 = vmatprep.subr.mxu0 0.0
    %629 = vmatpush1.msra.mxu0 %v596
    %630 = vmatprep.subr.mxu0 0.0
    %631 = vmatpush2.msra.mxu0 0.0
    %632 = vmatprep.subr.mxu0 0.0
    %633 = vmatpush2.msra.mxu0 0.0
    %634 = vmatprep.subr.mxu0 0.0
    %635 = vmatpush2.msra.mxu0 0.0
    %636 = vmatprep.subr.mxu0 0.0
    %637 = vmatpush2.msra.mxu0 0.0
    %638 = vmatprep.subr.mxu0 0.0
    %639 = vmatpush2.msra.mxu0 0.0
    %640 = vmatprep.subr.mxu0 0.0
    %641 = vmatpush2.msra.mxu0 0.0
    %642 = vmatprep.subr.mxu0 0.0
    %643 = vmatpush2.msra.mxu0 0.0
    %644 = vmatprep.subr.mxu0 0.0
    %645 = vmatpush2.msra.mxu0 0.0
    %646 = vmatprep.subr.mxu0 0.0
    %647 = vmatpush2.msra.mxu0 0.0
    %648 = vmatprep.subr.mxu0 0.0
    %649 = vmatpush2.msra.mxu0 0.0
    %650 = vmatprep.subr.mxu0 0.0
    %651 = vmatpush2.msra.mxu0 0.0
    %652 = vmatprep.subr.mxu0 0.0
    %653 = vmatpush2.msra.mxu0 0.0
    %654 = vmatprep.subr.mxu0 0.0
    %655 = vmatpush2.msra.mxu0 0.0
    %656 = vmatprep.subr.mxu0 0.0
    %657 = vmatpush2.msra.mxu0 0.0
    %658 = vmatprep.subr.mxu0 0.0
    %659 = vmatpush2.msra.mxu0 0.0
    %660 = vmatprep.subr.mxu0 0.0
    %661 = vmatpush2.msra.mxu0 0.0
    %662 = vmatprep.mubr.f32.mxu0 0.0
    %663 = vmatmul.mubr.f32.gmra.mxu0 %v593
    %v664 = vpop.f32.mrf.mxu0
    %v665 = vadd.f32 %v590, %v664
    %v666 = vpop.f32.mrf.mxu0
    %667 = vdwg.mxu0
    %v668 = vsel %vm298, %v665, 0.0
    %v669 = vrot.slane %v668, 4
    %v670 = vadd.f32 %v668, %v669
    %v671 = vrot.slane %v670, 2
    %v672 = vadd.f32 %v670, %v671
    %v673 = vrot.slane %v672, 1
    %v674 = vadd.f32 %v672, %v673
    %v675 = vmul.f32 %v674, %v306
    %v676 = vmul.f32 %v417, %v675
    %v677 = vmul.f32 %v418, %v675
    %v678 = vmul.f32 %v419, %v675
    %v679 = vmul.f32 %v420, %v675
    %s680 = scalar_lea.vmem %s2, 64
    %v681 = vld [vmem:[%s680] sm:$0xff]
    %v682 = vld [vmem:[%s680 + $0x8] sm:$0xff]
    %v683 = vld [vmem:[%s680 + $0x10] sm:$0xff]
    %v684 = vld [vmem:[%s680 + $0x18] sm:$0xff]
    %v685 = vld [vmem:[%s680 + $0x20] sm:$0xff]
    %v686 = vld [vmem:[%s680 + $0x28] sm:$0xff]
    %v687 = vld [vmem:[%s680 + $0x30] sm:$0xff]
    %v688 = vld [vmem:[%s680 + $0x38] sm:$0xff]
    %v690 = vsel %vm137, %v676, 0
    %v693 = vsel %vm137, %v677, 0
    %v696 = vsel %vm137, %v678, 0
    %v699 = vsel %vm137, %v679, 0
    %701 = vmatprep.subr.mxu0 0.0
    %702 = vmatpush1.msra.mxu0 0.0
    %703 = vmatprep.subr.mxu0 0.0
    %704 = vmatpush1.msra.mxu0 0.0
    %705 = vmatprep.subr.mxu0 0.0
    %706 = vmatpush1.msra.mxu0 0.0
    %707 = vmatprep.subr.mxu0 0.0
    %708 = vmatpush1.msra.mxu0 0.0
    %709 = vmatprep.subr.mxu0 0.0
    %710 = vmatpush1.msra.mxu0 0.0
    %711 = vmatprep.subr.mxu0 0.0
    %712 = vmatpush1.msra.mxu0 0.0
    %713 = vmatprep.subr.mxu0 0.0
    %714 = vmatpush1.msra.mxu0 0.0
    %715 = vmatprep.subr.mxu0 0.0
    %716 = vmatpush1.msra.mxu0 0.0
    %717 = vmatprep.subr.mxu0 0.0
    %718 = vmatpush1.msra.mxu0 %v688
    %719 = vmatprep.subr.mxu0 0.0
    %720 = vmatpush1.msra.mxu0 %v687
    %721 = vmatprep.subr.mxu0 0.0
    %722 = vmatpush1.msra.mxu0 %v686
    %723 = vmatprep.subr.mxu0 0.0
    %724 = vmatpush1.msra.mxu0 %v685
    %725 = vmatprep.subr.mxu0 0.0
    %726 = vmatpush1.msra.mxu0 %v684
    %727 = vmatprep.subr.mxu0 0.0
    %728 = vmatpush1.msra.mxu0 %v683
    %729 = vmatprep.subr.mxu0 0.0
    %730 = vmatpush1.msra.mxu0 %v682
    %731 = vmatprep.subr.mxu0 0.0
    %732 = vmatpush1.msra.mxu0 %v681
    %733 = vmatprep.subr.mxu0 0.0
    %734 = vmatpush2.msra.mxu0 0.0
    %735 = vmatprep.subr.mxu0 0.0
    %736 = vmatpush2.msra.mxu0 0.0
    %737 = vmatprep.subr.mxu0 0.0
    %738 = vmatpush2.msra.mxu0 0.0
    %739 = vmatprep.subr.mxu0 0.0
    %740 = vmatpush2.msra.mxu0 0.0
    %741 = vmatprep.subr.mxu0 0.0
    %742 = vmatpush2.msra.mxu0 0.0
    %743 = vmatprep.subr.mxu0 0.0
    %744 = vmatpush2.msra.mxu0 0.0
    %745 = vmatprep.subr.mxu0 0.0
    %746 = vmatpush2.msra.mxu0 0.0
    %747 = vmatprep.subr.mxu0 0.0
    %748 = vmatpush2.msra.mxu0 0.0
    %749 = vmatprep.subr.mxu0 0.0
    %750 = vmatpush2.msra.mxu0 0.0
    %751 = vmatprep.subr.mxu0 0.0
    %752 = vmatpush2.msra.mxu0 0.0
    %753 = vmatprep.subr.mxu0 0.0
    %754 = vmatpush2.msra.mxu0 0.0
    %755 = vmatprep.subr.mxu0 0.0
    %756 = vmatpush2.msra.mxu0 0.0
    %757 = vmatprep.subr.mxu0 0.0
    %758 = vmatpush2.msra.mxu0 0.0
    %759 = vmatprep.subr.mxu0 0.0
    %760 = vmatpush2.msra.mxu0 0.0
    %761 = vmatprep.subr.mxu0 0.0
    %762 = vmatpush2.msra.mxu0 0.0
    %763 = vmatprep.subr.mxu0 0.0
    %764 = vmatpush2.msra.mxu0 0.0
    %765 = vmatprep.mubr.f32.mxu0 0.0
    %766 = vmatmul.mubr.f32.gmra.mxu0 %v690
    %v767 = vpop.f32.mrf.mxu0
    %v768 = vadd.f32 0.0, %v767
    %v769 = vpop.f32.mrf.mxu0
    %770 = vmatprep.mubr.f32.mxu0 0.0
    %771 = vmatmul.mubr.f32.gmra.mxu0 %v693
    %v772 = vpop.f32.mrf.mxu0
    %v773 = vadd.f32 0.0, %v772
    %v774 = vpop.f32.mrf.mxu0
    %775 = vmatprep.mubr.f32.mxu0 0.0
    %776 = vmatmul.mubr.f32.gmra.mxu0 %v696
    %v777 = vpop.f32.mrf.mxu0
    %v778 = vadd.f32 0.0, %v777
    %v779 = vpop.f32.mrf.mxu0
    %780 = vmatprep.mubr.f32.mxu0 0.0
    %781 = vmatmul.mubr.f32.gmra.mxu0 %v699
    %v782 = vpop.f32.mrf.mxu0
    %v783 = vadd.f32 0.0, %v782
    %v784 = vpop.f32.mrf.mxu0
    %785 = vdwg.mxu0
    %v786 = vmax.f32 %v768, 0.0
    %v787 = vmax.f32 %v773, 0.0
    %v788 = vmax.f32 %v778, 0.0
    %v789 = vmax.f32 %v783, 0.0
    %790 = vmatprep.subr.mxu0 0.0
    %791 = vmatpush1.msra.mxu0 0.0
    %792 = vmatprep.subr.mxu0 0.0
    %793 = vmatpush1.msra.mxu0 0.0
    %794 = vmatprep.subr.mxu0 0.0
    %795 = vmatpush1.msra.mxu0 0.0
    %796 = vmatprep.subr.mxu0 0.0
    %797 = vmatpush1.msra.mxu0 0.0
    %798 = vmatprep.subr.mxu0 0.0
    %799 = vmatpush1.msra.mxu0 0.0
    %800 = vmatprep.subr.mxu0 0.0
    %801 = vmatpush1.msra.mxu0 0.0
    %802 = vmatprep.subr.mxu0 0.0
    %803 = vmatpush1.msra.mxu0 0.0
    %804 = vmatprep.subr.mxu0 0.0
    %805 = vmatpush1.msra.mxu0 0.0
    %806 = vmatprep.subr.mxu0 0.0
    %807 = vmatpush1.msra.mxu0 0.0
    %808 = vmatprep.subr.mxu0 0.0
    %809 = vmatpush1.msra.mxu0 0.0
    %810 = vmatprep.subr.mxu0 0.0
    %811 = vmatpush1.msra.mxu0 0.0
    %812 = vmatprep.subr.mxu0 0.0
    %813 = vmatpush1.msra.mxu0 0.0
    %814 = vmatprep.subr.mxu0 0.0
    %815 = vmatpush1.msra.mxu0 %v789
    %816 = vmatprep.subr.mxu0 0.0
    %817 = vmatpush1.msra.mxu0 %v788
    %818 = vmatprep.subr.mxu0 0.0
    %819 = vmatpush1.msra.mxu0 %v787
    %820 = vmatprep.subr.mxu0 0.0
    %821 = vmatpush1.msra.mxu0 %v786
    %822 = vmatprep.subr.mxu0 0.0
    %823 = vmatpush2.msra.mxu0 0.0
    %824 = vmatprep.subr.mxu0 0.0
    %825 = vmatpush2.msra.mxu0 0.0
    %826 = vmatprep.subr.mxu0 0.0
    %827 = vmatpush2.msra.mxu0 0.0
    %828 = vmatprep.subr.mxu0 0.0
    %829 = vmatpush2.msra.mxu0 0.0
    %830 = vmatprep.subr.mxu0 0.0
    %831 = vmatpush2.msra.mxu0 0.0
    %832 = vmatprep.subr.mxu0 0.0
    %833 = vmatpush2.msra.mxu0 0.0
    %834 = vmatprep.subr.mxu0 0.0
    %835 = vmatpush2.msra.mxu0 0.0
    %836 = vmatprep.subr.mxu0 0.0
    %837 = vmatpush2.msra.mxu0 0.0
    %838 = vmatprep.subr.mxu0 0.0
    %839 = vmatpush2.msra.mxu0 0.0
    %840 = vmatprep.subr.mxu0 0.0
    %841 = vmatpush2.msra.mxu0 0.0
    %842 = vmatprep.subr.mxu0 0.0
    %843 = vmatpush2.msra.mxu0 0.0
    %844 = vmatprep.subr.mxu0 0.0
    %845 = vmatpush2.msra.mxu0 0.0
    %846 = vmatprep.subr.mxu0 0.0
    %847 = vmatpush2.msra.mxu0 0.0
    %848 = vmatprep.subr.mxu0 0.0
    %849 = vmatpush2.msra.mxu0 0.0
    %850 = vmatprep.subr.mxu0 0.0
    %851 = vmatpush2.msra.mxu0 0.0
    %852 = vmatprep.subr.mxu0 0.0
    %853 = vmatpush2.msra.mxu0 0.0
    %854 = vmatprep.mubr.f32.mxu0 0.0
    %855 = vmatmul.mubr.f32.gmra.mxu0 %v50
    %v856 = vpop.f32.mrf.mxu0
    %v857 = vadd.f32 0.0, %v856
    %v858 = vpop.f32.mrf.mxu0
    %859 = vdwg.mxu0
    %v860 = vld [vmem:[%s7] sm:$0xff]
    %v861 = vld [vmem:[%s7 + $0x8] sm:$0xff]
    %v862 = vld [vmem:[%s7 + $0x10] sm:$0xff]
    %v863 = vld [vmem:[%s7 + $0x18] sm:$0xff]
    %v864 = vld [vmem:[%s7 + $0x20] sm:$0xff]
    %v865 = vld [vmem:[%s7 + $0x28] sm:$0xff]
    %v866 = vld [vmem:[%s7 + $0x30] sm:$0xff]
    %v867 = vld [vmem:[%s7 + $0x38] sm:$0xff]
    %v868 = vld [vmem:[%s8] sm:$0x1]
    %v870 = vlaneseq
    %v871 = vshrl.u32 %v870, 7
    %v872 = vsub.s32 0, %v871
    %v873 = vrot.slane %v868, %v872
    %v876 = vsel %vm137, %v857, 0
    %878 = vmatprep.subr.mxu0 0.0
    %879 = vmatpush1.msra.mxu0 0.0
    %880 = vmatprep.subr.mxu0 0.0
    %881 = vmatpush1.msra.mxu0 0.0
    %882 = vmatprep.subr.mxu0 0.0
    %883 = vmatpush1.msra.mxu0 0.0
    %884 = vmatprep.subr.mxu0 0.0
    %885 = vmatpush1.msra.mxu0 0.0
    %886 = vmatprep.subr.mxu0 0.0
    %887 = vmatpush1.msra.mxu0 0.0
    %888 = vmatprep.subr.mxu0 0.0
    %889 = vmatpush1.msra.mxu0 0.0
    %890 = vmatprep.subr.mxu0 0.0
    %891 = vmatpush1.msra.mxu0 0.0
    %892 = vmatprep.subr.mxu0 0.0
    %893 = vmatpush1.msra.mxu0 0.0
    %894 = vmatprep.subr.mxu0 0.0
    %895 = vmatpush1.msra.mxu0 %v867
    %896 = vmatprep.subr.mxu0 0.0
    %897 = vmatpush1.msra.mxu0 %v866
    %898 = vmatprep.subr.mxu0 0.0
    %899 = vmatpush1.msra.mxu0 %v865
    %900 = vmatprep.subr.mxu0 0.0
    %901 = vmatpush1.msra.mxu0 %v864
    %902 = vmatprep.subr.mxu0 0.0
    %903 = vmatpush1.msra.mxu0 %v863
    %904 = vmatprep.subr.mxu0 0.0
    %905 = vmatpush1.msra.mxu0 %v862
    %906 = vmatprep.subr.mxu0 0.0
    %907 = vmatpush1.msra.mxu0 %v861
    %908 = vmatprep.subr.mxu0 0.0
    %909 = vmatpush1.msra.mxu0 %v860
    %910 = vmatprep.subr.mxu0 0.0
    %911 = vmatpush2.msra.mxu0 0.0
    %912 = vmatprep.subr.mxu0 0.0
    %913 = vmatpush2.msra.mxu0 0.0
    %914 = vmatprep.subr.mxu0 0.0
    %915 = vmatpush2.msra.mxu0 0.0
    %916 = vmatprep.subr.mxu0 0.0
    %917 = vmatpush2.msra.mxu0 0.0
    %918 = vmatprep.subr.mxu0 0.0
    %919 = vmatpush2.msra.mxu0 0.0
    %920 = vmatprep.subr.mxu0 0.0
    %921 = vmatpush2.msra.mxu0 0.0
    %922 = vmatprep.subr.mxu0 0.0
    %923 = vmatpush2.msra.mxu0 0.0
    %924 = vmatprep.subr.mxu0 0.0
    %925 = vmatpush2.msra.mxu0 0.0
    %926 = vmatprep.subr.mxu0 0.0
    %927 = vmatpush2.msra.mxu0 0.0
    %928 = vmatprep.subr.mxu0 0.0
    %929 = vmatpush2.msra.mxu0 0.0
    %930 = vmatprep.subr.mxu0 0.0
    %931 = vmatpush2.msra.mxu0 0.0
    %932 = vmatprep.subr.mxu0 0.0
    %933 = vmatpush2.msra.mxu0 0.0
    %934 = vmatprep.subr.mxu0 0.0
    %935 = vmatpush2.msra.mxu0 0.0
    %936 = vmatprep.subr.mxu0 0.0
    %937 = vmatpush2.msra.mxu0 0.0
    %938 = vmatprep.subr.mxu0 0.0
    %939 = vmatpush2.msra.mxu0 0.0
    %940 = vmatprep.subr.mxu0 0.0
    %941 = vmatpush2.msra.mxu0 0.0
    %942 = vmatprep.mubr.f32.mxu0 0.0
    %943 = vmatmul.mubr.f32.gmra.mxu0 %v876
    %v944 = vpop.f32.mrf.mxu0
    %v945 = vadd.f32 %v873, %v944
    %v946 = vpop.f32.mrf.mxu0
    %947 = vdwg.mxu0
    %v948 = vtanh.pop %v945
    %v949 = vld [vmem:[%s9] sm:$0xff]
    %v950 = vld [vmem:[%s9 + $0x8] sm:$0xff]
    %v951 = vld [vmem:[%s9 + $0x10] sm:$0xff]
    %v952 = vld [vmem:[%s9 + $0x18] sm:$0xff]
    %v953 = vld [vmem:[%s9 + $0x20] sm:$0xff]
    %v954 = vld [vmem:[%s9 + $0x28] sm:$0xff]
    %v955 = vld [vmem:[%s9 + $0x30] sm:$0xff]
    %v956 = vld [vmem:[%s9 + $0x38] sm:$0xff]
    %v957 = vld [vmem:[%s9 + $0x40] sm:$0xff]
    %v958 = vld [vmem:[%s9 + $0x48] sm:$0xff]
    %v959 = vld [vmem:[%s9 + $0x50] sm:$0xff]
    %v960 = vld [vmem:[%s9 + $0x58] sm:$0xff]
    %v961 = vld [vmem:[%s9 + $0x60] sm:$0xff]
    %v962 = vld [vmem:[%s9 + $0x68] sm:$0xff]
    %v963 = vld [vmem:[%s9 + $0x70] sm:$0xff]
    %v964 = vld [vmem:[%s9 + $0x78] sm:$0xff]
    %v965 = vld [vmem:[%s10] sm:$0x1]
    %v967 = vlaneseq
    %v968 = vshrl.u32 %v967, 7
    %v969 = vsub.s32 0, %v968
    %v970 = vrot.slane %v965, %v969
    %972 = vmatprep.subr.mxu0 0.0
    %973 = vmatpush1.msra.mxu0 %v964
    %974 = vmatprep.subr.mxu0 0.0
    %975 = vmatpush1.msra.mxu0 %v963
    %976 = vmatprep.subr.mxu0 0.0
    %977 = vmatpush1.msra.mxu0 %v962
    %978 = vmatprep.subr.mxu0 0.0
    %979 = vmatpush1.msra.mxu0 %v961
    %980 = vmatprep.subr.mxu0 0.0
    %981 = vmatpush1.msra.mxu0 %v960
    %982 = vmatprep.subr.mxu0 0.0
    %983 = vmatpush1.msra.mxu0 %v959
    %984 = vmatprep.subr.mxu0 0.0
    %985 = vmatpush1.msra.mxu0 %v958
    %986 = vmatprep.subr.mxu0 0.0
    %987 = vmatpush1.msra.mxu0 %v957
    %988 = vmatprep.subr.mxu0 0.0
    %989 = vmatpush1.msra.mxu0 %v956
    %990 = vmatprep.subr.mxu0 0.0
    %991 = vmatpush1.msra.mxu0 %v955
    %992 = vmatprep.subr.mxu0 0.0
    %993 = vmatpush1.msra.mxu0 %v954
    %994 = vmatprep.subr.mxu0 0.0
    %995 = vmatpush1.msra.mxu0 %v953
    %996 = vmatprep.subr.mxu0 0.0
    %997 = vmatpush1.msra.mxu0 %v952
    %998 = vmatprep.subr.mxu0 0.0
    %999 = vmatpush1.msra.mxu0 %v951
    %1000 = vmatprep.subr.mxu0 0.0
    %1001 = vmatpush1.msra.mxu0 %v950
    %1002 = vmatprep.subr.mxu0 0.0
    %1003 = vmatpush1.msra.mxu0 %v949
    %1004 = vmatprep.subr.mxu0 0.0
    %1005 = vmatpush2.msra.mxu0 0.0
    %1006 = vmatprep.subr.mxu0 0.0
    %1007 = vmatpush2.msra.mxu0 0.0
    %1008 = vmatprep.subr.mxu0 0.0
    %1009 = vmatpush2.msra.mxu0 0.0
    %1010 = vmatprep.subr.mxu0 0.0
    %1011 = vmatpush2.msra.mxu0 0.0
    %1012 = vmatprep.subr.mxu0 0.0
    %1013 = vmatpush2.msra.mxu0 0.0
    %1014 = vmatprep.subr.mxu0 0.0
    %1015 = vmatpush2.msra.mxu0 0.0
    %1016 = vmatprep.subr.mxu0 0.0
    %1017 = vmatpush2.msra.mxu0 0.0
    %1018 = vmatprep.subr.mxu0 0.0
    %1019 = vmatpush2.msra.mxu0 0.0
    %1020 = vmatprep.subr.mxu0 0.0
    %1021 = vmatpush2.msra.mxu0 0.0
    %1022 = vmatprep.subr.mxu0 0.0
    %1023 = vmatpush2.msra.mxu0 0.0
    %1024 = vmatprep.subr.mxu0 0.0
    %1025 = vmatpush2.msra.mxu0 0.0
    %1026 = vmatprep.subr.mxu0 0.0
    %1027 = vmatpush2.msra.mxu0 0.0
    %1028 = vmatprep.subr.mxu0 0.0
    %1029 = vmatpush2.msra.mxu0 0.0
    %1030 = vmatprep.subr.mxu0 0.0
    %1031 = vmatpush2.msra.mxu0 0.0
    %1032 = vmatprep.subr.mxu0 0.0
    %1033 = vmatpush2.msra.mxu0 0.0
    %1034 = vmatprep.subr.mxu0 0.0
    %1035 = vmatpush2.msra.mxu0 0.0
    %1036 = vmatprep.mubr.f32.mxu0 0.0
    %1037 = vmatmul.mubr.f32.gmra.mxu0 %v948
    %v1038 = vpop.f32.mrf.mxu0
    %v1039 = vadd.f32 %v970, %v1038
    %v1040 = vpop.f32.mrf.mxu0
    %1041 = vdwg.mxu0
    %vm1042 = vcmask 9216
    %v1043 = vsel %vm1042, %v1039, -inf
    %1044 = vmax.xlane.f32.xlu0 %v1043
    %v1045 = vpop.xlane.xlu0 %1044
    %v1046 = vsub.f32 %v1039, %v1045
    %v1047 = vmul.f32 %v1046, 1.442695
    %v1048 = vpow.pop %v1047
    %v1049 = vsel %vm1042, %v1048, 0.0
    %1050 = vadd.xlane.f32.xlu0 %v1049
    %v1051 = vpop.xlane.xlu0 %1050
    %v1052 = vrcp.pop %v1051
    %v1053 = vmul.f32 %v1048, %v1052
    %1054 = vst.msk [vmem:[#allocation2] sm:$0x3] %vm1042, %v1053
    // Predicated region
    $region46: #{gcn_forward_fn.1} parent=1 // pred_check
      _
    $region47: #{gcn_forward_fn.1} parent=1 // pred_check_branch
      %1056 = sbr.rel (0) target = $region49
    $region48: #{gcn_forward_fn.1} parent=1 // pred_region
      %s1058 = ssub.s32 32, 32
      %1059 = vsyncadd [#allocation3], %s1058
      %s1061 = sshll.u32 [#allocation2], 4
      %s1062 = int_to_ptr.vmem [resolvable:$true] %s1061
      %1064 = dma.vmem_to_hbm [thread:$0]  %s1062, 32, %s11, [#allocation3]
    $region49: #{gcn_forward_fn.1} parent=1 // pred_fallthru
      _
    // Predicated region
    $region50: #{gcn_forward_fn.1} parent=1 // pred_check
      _
    $region51: #{gcn_forward_fn.1} parent=1 // pred_check_branch
      %1066 = sbr.rel (0) target = $region53
    $region52: #{gcn_forward_fn.1} parent=1 // pred_region
      %1067 = dma.done [#allocation3], 32
    $region53: #{gcn_forward_fn.1} parent=1 // pred_fallthru
      _
    %1068 = vsyncpa [#allocation3], 1

</llo_original>
